<compile_context>
chip_gen: v5e
topology: v5e:2x2
jax: 0.10.0
libtpu: 0.0.40
codegen_flags: <defaults>
</compile_context>

<pallas_src>
import jax
import jax.numpy as jnp
import numpy as np
from jax.experimental import pallas as pl
from jax.experimental.pallas import tpu as pltpu


_MASK_LANE_BYTES = 128 * 4                 # one (.,1) f32 mask row lane-pads to 128 lanes
_VMEM_BUFFER_BUDGET = 26 * 1024 * 1024     # target for all double-buffered blocks
_VMEM_LIMIT_BYTES = 48 * 1024 * 1024       # explicit scoped-VMEM limit (v5e/v6e/v7x safe)
_RESIDENT_MASK_MAX_BYTES = 1 * 1024 * 1024 # keep whole mask in VMEM only if this small


def _round_up(x, m):
    return -(-x // m) * m


def _sublane_tile(dtype):
    # dtype-native sublane tile: 8 for f32, 16 for bf16/f16, 32 for int8/fp8.
    return max(8, 32 // np.dtype(dtype).itemsize)


def _prefer_divisor(total, tile, step):
    """Find a divisor of `total` that is a multiple of `step` in [tile/2, tile]."""
    lo = max(step, tile // 2)
    for t in range(tile, lo - 1, -step):
        if total % t == 0:
            return t
    return tile


def _choose_tiles(bc, l, dtype):
    """Pick (tile_bc, tile_l) so all double-buffered blocks fit the VMEM budget.

    Block bytes are computed with the lane axis padded up to a multiple of 128
    and the sublane axis rounded to the dtype-native tile, and they include the
    lane-padded (tile_bc, 1) f32 mask block.
    """
    itemsize = np.dtype(dtype).itemsize
    sub = _sublane_tile(dtype)

    def x_row_bytes(tile_l):
        return _round_up(tile_l, 128) * itemsize

    def per_row_bytes(tile_l):
        # One row's worth of double-buffered x + out + mask blocks.
        return 2 * (2 * x_row_bytes(tile_l) + _MASK_LANE_BYTES)

    min_rows = min(bc, sub)
    if min_rows * per_row_bytes(l) <= _VMEM_BUFFER_BUDGET:
        # Full L fits: tile only the row (B*C) axis.
        tile_l = l
        rows = _VMEM_BUFFER_BUDGET // per_row_bytes(l)
        tile_bc = min(bc, (rows // sub) * sub)
        tile_bc = max(tile_bc, min_rows)
        if tile_bc < bc:
            tile_bc = _prefer_divisor(bc, tile_bc, sub)
    else:
        # Even the minimum legal row group is too big with full L: tile L too.
        tile_bc = bc if bc <= sub else sub
        padded_rows = _round_up(tile_bc, sub)
        avail = _VMEM_BUFFER_BUDGET - 2 * padded_rows * _MASK_LANE_BYTES
        lanes = avail // (4 * padded_rows * itemsize)
        tile_l = max(128, (lanes // 128) * 128)
        if l % 128 == 0 and tile_l < l:
            tile_l = _prefer_divisor(l, tile_l, 128)
    return tile_bc, tile_l


def channel_dropout(x, p, seed, *, training=True):
    """Pallas implementation of ChannelDropout.forward on a (B, C, L) tensor."""
    assert x.ndim == 3, "ChannelDropout expects a 3D input (B, C, L)"
    # p / training must be static Python values (as in the PyTorch module).
    if not training or p == 0.0:
        return x
    B, C, L = x.shape
    if p >= 1.0:
        return jnp.zeros_like(x)

    BC = B * C
    dtype = x.dtype
    itemsize = np.dtype(dtype).itemsize
    sub = _sublane_tile(dtype)

    tile_bc, tile_l = _choose_tiles(BC, L, dtype)
    grid_rows = pl.cdiv(BC, tile_bc)
    grid_cols = pl.cdiv(L, tile_l)

    # Guarantee >= 2 grid steps when possible so the ("parallel", "parallel")
    # grid can be sharded across v7x's two TensorCores (no-op on v5e/v6e).
    if grid_rows * grid_cols < 2 and BC >= 2 * sub:
        tile_bc = max(sub, ((BC // 2) // sub) * sub)
        grid_rows = pl.cdiv(BC, tile_bc)

    # Per-(batch, channel) keep/scale mask, padded to a whole number of row
    # blocks so in-kernel slicing never reads out of bounds. Built in float32
    # (PyTorch-parity scaling); negligible HBM traffic.
    bc_pad = grid_rows * tile_bc
    key = jax.random.PRNGKey(seed)
    keep = jax.random.bernoulli(key, 1.0 - p, (bc_pad, 1))
    mask = jnp.where(keep, jnp.float32(1.0 / (1.0 - p)), jnp.float32(0.0))

    x2 = x.reshape(BC, L)  # glue reshape in plain JAX (no data movement)

    # Keep the whole mask resident in VMEM (DMA'd once via a constant
    # index_map) if its lane-padded, double-buffered footprint is small.
    mask_vmem_bytes = 2 * _round_up(bc_pad, 8) * _MASK_LANE_BYTES
    resident_mask = mask_vmem_bytes <= 2 * _RESIDENT_MASK_MAX_BYTES

    if resident_mask:
        def kernel(x_ref, m_ref, o_ref):
            start = pl.multiple_of(pl.program_id(0) * tile_bc, tile_bc)
            m = m_ref[pl.ds(start, tile_bc), :]
            o_ref[...] = (x_ref[...].astype(jnp.float32) * m).astype(o_ref.dtype)

        mask_spec = pl.BlockSpec((bc_pad, 1), lambda i, j: (0, 0))
    else:
        def kernel(x_ref, m_ref, o_ref):
            o_ref[...] = (x_ref[...].astype(jnp.float32) * m_ref[...]).astype(o_ref.dtype)

        mask_spec = pl.BlockSpec((tile_bc, 1), lambda i, j: (i, 0))

    out2 = pl.pallas_call(
        kernel,
        out_shape=jax.ShapeDtypeStruct((BC, L), dtype),
        grid=(grid_rows, grid_cols),
        in_specs=[
            pl.BlockSpec((tile_bc, tile_l), lambda i, j: (i, j)),  # x rows
            mask_spec,                                             # per-row mask
        ],
        out_specs=pl.BlockSpec((tile_bc, tile_l), lambda i, j: (i, j)),
        compiler_params=pltpu.CompilerParams(
            dimension_semantics=("parallel", "parallel"),
            vmem_limit_bytes=_VMEM_LIMIT_BYTES,
        ),
        cost_estimate=pl.CostEstimate(
            flops=BC * L,
            transcendentals=0,
            bytes_accessed=2 * BC * L * itemsize + bc_pad * 4,
        ),
    )(x2, mask)

    return out2.reshape(B, C, L)


def _check_channel_dropout(x, p, seed):
    """Verify Dropout2d semantics: each (b, c) row is all-zero or all x/(1-p)."""
    out = jax.block_until_ready(channel_dropout(x, p, seed))
    B, C, L = x.shape
    out_np = np.asarray(out).reshape(B * C, L)
    x_np = np.asarray(x).reshape(B * C, L)
    scale = 1.0 / (1.0 - p)
    for row in range(B * C):
        dropped = np.allclose(out_np[row], 0.0)
        kept = np.allclose(out_np[row], x_np[row] * scale, rtol=1e-5, atol=1e-5)
        assert dropped or kept, f"row {row}: not a whole-channel drop/keep"
    return out


if __name__ == "__main__":
    key = jax.random.PRNGKey(0)

    # Small shape matching the module's 3D (B, C, L) input.
    B, C, L = 2, 4, 16
    x = jax.random.normal(key, (B, C, L), dtype=jnp.float32)
    _check_channel_dropout(x, p=0.5, seed=0)

    # Slightly larger case that exercises a multi-step row grid
    # (>= 2 "parallel" steps) and the resident-mask in-kernel slicing.
    k2 = jax.random.PRNGKey(1)
    x2 = jax.random.normal(k2, (2, 64, 256), dtype=jnp.float32)
    _check_channel_dropout(x2, p=0.25, seed=3)

    # p = 0 passthrough and p = 1 all-zero edge cases.
    assert np.allclose(np.asarray(channel_dropout(x, 0.0, seed=0)), np.asarray(x))
    assert np.allclose(np.asarray(jax.block_until_ready(
        channel_dropout(x, 1.0, seed=0))), 0.0)

    print("KERNEL_OK")
</pallas_src>

<mosaic_0001>
module attributes {stable_mosaic.version = 11 : i64} {
  func.func @kernel(%arg0: i32, %arg1: i32, %arg2: memref<8x16xf32, #tpu.memory_space<vmem>>, %arg3: memref<8x1xf32, #tpu.memory_space<vmem>>, %arg4: memref<8x16xf32, #tpu.memory_space<vmem>>) attributes {dimension_semantics = [#tpu.dimension_semantics<parallel>, #tpu.dimension_semantics<parallel>], iteration_bounds = array<i64: 1, 1>, scalar_prefetch = 0 : i64, scratch_operands = 0 : i64, tpu.core_type = #tpu.core_type<tc>, window_params = [{transform_indices = @transform_0, window_bounds = array<i64: 8, 16>}, {pipeline_mode = #tpu.pipeline_mode<synchronous>, transform_indices = @transform_1, window_bounds = array<i64: 8, 1>}, {transform_indices = @transform_2, window_bounds = array<i64: 8, 16>}]} {
    %c8_i32 = arith.constant 8 : i32
    %0 = arith.muli %arg0, %c8_i32 : i32
    %1 = tpu.assume_multiple %0, 8 : i32
    %2 = arith.index_cast %1 : i32 to index
    %c0 = arith.constant 0 : index
    %3 = vector.load %arg3[%2, %c0] : memref<8x1xf32, #tpu.memory_space<vmem>>, vector<8x1xf32>
    %c0_0 = arith.constant 0 : index
    %c0_1 = arith.constant 0 : index
    %4 = vector.load %arg2[%c0_0, %c0_1] : memref<8x16xf32, #tpu.memory_space<vmem>>, vector<8x16xf32>
    %5 = vector.broadcast %3 : vector<8x1xf32> to vector<8x16xf32>
    %6 = arith.mulf %4, %5 : vector<8x16xf32>
    %c0_2 = arith.constant 0 : index
    %c0_3 = arith.constant 0 : index
    %7 = vector.load %arg4[%c0_2, %c0_3] : memref<8x16xf32, #tpu.memory_space<vmem>>, vector<8x16xf32>
    tpu.vector_store %arg4[%c0_2, %c0_3], %6 {strides = array<i32>} : memref<8x16xf32, #tpu.memory_space<vmem>>, vector<8x16xf32>,
    return
  }
  func.func @transform_0(%arg0: i32, %arg1: i32) -> (i32, i32) {
    %c0_i32 = arith.constant 0 : i32
    return %arg0, %arg1 : i32, i32
  }
  func.func @transform_1(%arg0: i32, %arg1: i32) -> (i32, i32) {
    %c0_i32 = arith.constant 0 : i32
    %c0_i32_0 = arith.constant 0 : i32
    %c0_i32_1 = arith.constant 0 : i32
    return %c0_i32, %c0_i32_0 : i32, i32
  }
  func.func @transform_2(%arg0: i32, %arg1: i32) -> (i32, i32) {
    %c0_i32 = arith.constant 0 : i32
    return %arg0, %arg1 : i32, i32
  }
}

</mosaic_0001>

<llo_original>
// kernel: tpu_custom_call.1
$region0: #{tpu_custom_call.1}
  #allocation0 [shape = 'u32[]', space=smem, size = 0x4, offset = 0x4, fixed_abs, tag = 'smem constant byte address 0x4 - core index']
  #allocation1 [shape = 'u32[72,128]{1,0:T(1,128)}', space=vmem, size = 0x9000, scoped, tag = 'internal scratch']
  %s0 = inlined_call_operand.vmem [shape: f32[8,16], index: 0, kind: input, shape index: {}]
  %s1 = inlined_call_operand.vmem [shape: f32[8,1], index: 1, kind: input, shape index: {}]
  %s2 = inlined_call_operand.hbm [shape: f32[8,16], index: 2, kind: output, shape index: {}]
  %s3 = sld [smem:[#allocation0]]
  $region18: #{tpu_custom_call.1} parent=0
    _
  %s5 = ssub.s32 1, %s3
  %s6 = scalar_select 0, %s5, %s3
  $region1: #{tpu_custom_call.1} parent=0
    #allocation2 [shape = 'u8[4096]{0}', space=vmem, size = 0x1000, scoped, tag = 'output window, operand 0, single buffered']
    #allocation3 [shape = 's32[1]{0}', space=sflag, size = 0x4, scoped, tag = 'scoped memory for tpu_custom_call.1']
    %7 = vsyncpa [#allocation3], 0
    // Predicated region
    $region2: #{tpu_custom_call.1} parent=1 // pred_check
      _
    $region3: #{tpu_custom_call.1} parent=1 // pred_check_branch
      %9 = sbr.rel (0) target = $region5
    $region4: #{tpu_custom_call.1} parent=1 // pred_region
      _
    $region5: #{tpu_custom_call.1} parent=1 // pred_fallthru
      _
    // Predicated region
    $region6: #{tpu_custom_call.1} parent=1 // pred_check
      _
    $region7: #{tpu_custom_call.1} parent=1 // pred_check_branch
      %11 = sbr.rel (0) target = $region9
    $region8: #{tpu_custom_call.1} parent=1 // pred_region
      _
    $region9: #{tpu_custom_call.1} parent=1 // pred_fallthru
      _
    %s12 = smul.u32 0, 8
    %s13 = scalar_lea.vmem %s1, %s12
    %v14 = vld [vmem:[%s13] sm:$0xff]
    %v15 = vld [vmem:[%s0] sm:$0xff]
    %17 = vset.pattern.permute.xlu0 0
    %18 = vperm.xlu0 %17, %v14
    %v19 = vpop.permute.xlu0 %18
    %v21 = vmul.f32 %v15, %v19
    %vm22 = vcmask 130048
    %23 = vst.msk [vmem:[#allocation2] sm:$0xff] %vm22, %v21
    // Predicated region
    $region10: #{tpu_custom_call.1} parent=1 // pred_check
      _
    $region11: #{tpu_custom_call.1} parent=1 // pred_check_branch
      %25 = sbr.rel (0) target = $region13
    $region12: #{tpu_custom_call.1} parent=1 // pred_region
      %27 = vsyncadd [#allocation3], 0
      %s29 = sshll.u32 [#allocation2], 4
      %s30 = int_to_ptr.vmem [resolvable:$true] %s29
      %s31 = sshll.u32 %s2, 4
      %s32 = int_to_ptr.hbm [resolvable:$true] %s31
      %34 = dma.vmem_to_hbm [thread:$0]  %s30, 128, %s32, [#allocation3]
    $region13: #{tpu_custom_call.1} parent=1 // pred_fallthru
      _
    // Predicated region
    $region14: #{tpu_custom_call.1} parent=1 // pred_check
      _
    $region15: #{tpu_custom_call.1} parent=1 // pred_check_branch
      %36 = sbr.rel (0) target = $region17
    $region16: #{tpu_custom_call.1} parent=1 // pred_region
      %38 = dma.done [#allocation3], 128
    $region17: #{tpu_custom_call.1} parent=1 // pred_fallthru
      _
    %39 = vsyncpa [#allocation3], 1

</llo_original>
